<compile_context>
chip_gen: v7x
topology: tpu7x:2x2x1
jax: 0.10.0
libtpu: 0.0.40
codegen_flags: <defaults>
</compile_context>

<pallas_src>
import functools

import jax
import jax.numpy as jnp
from jax.experimental import pallas as pl
from jax.experimental.pallas import tpu as pltpu


_TINY_BYTES = 1 << 20            # below this, plain XLA beats any Pallas launch
_TILE_BYTE_TARGET = 6 << 20      # ~6 MiB per x buffer (~85% of HBM roofline)
_MIN_TILES_FOR_BALANCE = 4       # let v7x's 2 TCs load-balance the parallel axis
_VMEM_LIMIT_CAP = 48 << 20       # stay well inside v7x's 64 MiB physical VMEM


def _loglinear_kernel(x_ref, w_ref, b_ref, o_ref, *, apply_predict):
    # x_ref: (TB, D) native dtype   w_ref: (1, D) f32   b_ref: (1, 1) f32 SMEM
    x = x_ref[...].astype(jnp.float32)        # cast in vregs (free VPU slot)
    w = w_ref[...].astype(jnp.float32)        # lane-dense weight row
    # VPU multiply + XLU cross-lane reduce (avoids N=1 MXU matmul entirely).
    acc = jnp.sum(x * w, axis=-1, keepdims=True) + b_ref[0, 0]
    if apply_predict:
        # Fused epilogue: sigmoid on the EUP (idle slot) + round on the VPU.
        acc = jnp.round(jax.nn.sigmoid(acc))
    o_ref[...] = acc


def _round_up(v, m):
    return ((v + m - 1) // m) * m


def _pick_tile_rows(B, D, itemsize):
    """Rows per x tile: ~6 MiB byte budget, multiple of 32, >=4 tiles when B allows."""
    rows = _TILE_BYTE_TARGET // max(1, D * itemsize)
    rows = max(32, (rows // 32) * 32)
    # Cap so the parallel grid axis has at least _MIN_TILES_FOR_BALANCE tiles
    # (keeps both v7x TensorCores streaming; no-op for huge B).
    if B >= _MIN_TILES_FOR_BALANCE * 32:
        balance_rows = _round_up(pl.cdiv(B, _MIN_TILES_FOR_BALANCE), 32)
        rows = min(rows, balance_rows)
    rows = max(32, rows)
    if B <= rows:
        return B                 # single full-extent block (exception to the /8 rule)
    return rows


def _loglinear_call(x, weight, bias, *, predict, force_pallas=False):
    B, D = x.shape
    w_row = jnp.asarray(weight, dtype=jnp.float32).reshape(1, D)  # lane-dense row
    b = jnp.asarray(bias, dtype=jnp.float32).reshape(1, 1)

    # Tiny-problem fallback: launch + pipeline prologue would dominate.
    if not force_pallas and B * D * x.dtype.itemsize < _TINY_BYTES:
        y = x.astype(jnp.float32) @ w_row.reshape(D, 1) + b
        if predict:
            y = jnp.round(jax.nn.sigmoid(y))
        return y

    tb = _pick_tile_rows(B, D, x.dtype.itemsize)
    num_tiles = pl.cdiv(B, tb)

    x_spec_kwargs = {}
    n_x_bufs = 2
    if num_tiles > 1:
        # Deeper pipeline on the streamed operand only; w/out stay at default.
        x_spec_kwargs["pipeline_mode"] = pl.Buffered(3)
        n_x_bufs = 3

    tile_bytes = tb * D * x.dtype.itemsize
    vmem_est = n_x_bufs * tile_bytes + 2 * tb * 4 + 2 * D * 4 + (1 << 20)
    vmem_limit = int(min(_VMEM_LIMIT_CAP, max(vmem_est, 32 << 20)))

    cost = pl.CostEstimate(
        flops=2 * B * D,
        transcendentals=B if predict else 0,
        bytes_accessed=B * D * x.dtype.itemsize + B * 4 + D * 4,
    )

    kernel = functools.partial(_loglinear_kernel, apply_predict=predict)
    return pl.pallas_call(
        kernel,
        out_shape=jax.ShapeDtypeStruct((B, 1), jnp.float32),
        grid_spec=pl.GridSpec(
            grid=(num_tiles,),
            in_specs=[
                pl.BlockSpec((tb, D), lambda i: (i, 0), **x_spec_kwargs),  # x row tile
                pl.BlockSpec((1, D), lambda i: (0, 0)),                    # weight row (resident)
                pl.BlockSpec(memory_space=pltpu.MemorySpace.SMEM),         # bias scalar
            ],
            out_specs=pl.BlockSpec((tb, 1), lambda i: (i, 0)),
        ),
        compiler_params=pltpu.CompilerParams(
            dimension_semantics=("parallel",),   # v7x: shard row-tiles across 2 TCs
            vmem_limit_bytes=vmem_limit,
        ),
        cost_estimate=cost,
    )(x, w_row, b)


def loglinear_forward(x, weight, bias, *, force_pallas=False):
    """Pallas equivalent of LogLinear.forward.

    Args:
      x:      (B, D) any float dtype (cast to f32 *inside* the kernel).
      weight: (D, 1), (1, D) or (D,) — the linear weight.
      bias:   () or (1,) float.
      force_pallas: bypass the tiny-problem XLA fallback (for testing).

    Returns:
      (B, 1) float32.
    """
    return _loglinear_call(x, weight, bias, predict=False, force_pallas=force_pallas)


def loglinear_predict(x, weight, bias, *, force_pallas=False):
    """Pallas equivalent of LogLinear.predict: round(sigmoid(forward(x))), fused."""
    return _loglinear_call(x, weight, bias, predict=True, force_pallas=force_pallas)


if __name__ == "__main__":
    key = jax.random.PRNGKey(0)
    k_x, k_w, k_b, k_big, k_part = jax.random.split(key, 5)

    batch = 16
    embedding_dim = 64

    # Example input (e.g. sentence embeddings).
    x = jax.random.normal(k_x, (batch, embedding_dim), dtype=jnp.float32)

    # Deterministic parameter init matching nn.Linear's default:
    # uniform(-1/sqrt(fan_in), 1/sqrt(fan_in)).
    bound = 1.0 / jnp.sqrt(jnp.float32(embedding_dim))
    weight = jax.random.uniform(
        k_w, (embedding_dim, 1), minval=-bound, maxval=bound, dtype=jnp.float32
    )
    bias = jax.random.uniform(
        k_b, (1,), minval=-bound, maxval=bound, dtype=jnp.float32
    )

    ref = x @ weight + bias.reshape(1, 1)

    # --- forward: f32 input, Pallas path forced on the small shape ---
    out = jax.block_until_ready(loglinear_forward(x, weight, bias, force_pallas=True))
    assert out.shape == (batch, 1)
    assert out.dtype == jnp.float32
    assert jnp.allclose(out, ref, atol=1e-5, rtol=1e-5)

    # --- forward: bf16 input (native-dtype HBM reads, cast happens in-kernel) ---
    x_bf16 = x.astype(jnp.bfloat16)
    out_bf16 = jax.block_until_ready(
        loglinear_forward(x_bf16, weight, bias, force_pallas=True)
    )
    ref_bf16 = x_bf16.astype(jnp.float32) @ weight + bias.reshape(1, 1)
    assert out_bf16.shape == (batch, 1)
    assert out_bf16.dtype == jnp.float32
    assert jnp.allclose(out_bf16, ref_bf16, atol=1e-3, rtol=1e-3)

    # --- predict: fused sigmoid + round epilogue ---
    preds = jax.block_until_ready(loglinear_predict(x, weight, bias, force_pallas=True))
    preds_ref = jnp.round(jax.nn.sigmoid(ref))
    assert preds.shape == (batch, 1)
    assert jnp.allclose(preds, preds_ref)

    # --- multi-tile pipelined path: grid of 4 tiles, Buffered(3), bf16 input ---
    Bb = 512
    xb = jax.random.normal(k_big, (Bb, embedding_dim), dtype=jnp.bfloat16)
    outb = jax.block_until_ready(loglinear_forward(xb, weight, bias, force_pallas=True))
    refb = xb.astype(jnp.float32) @ weight + bias.reshape(1, 1)
    assert outb.shape == (Bb, 1)
    assert jnp.allclose(outb, refb, atol=1e-3, rtol=1e-3)

    # --- partial last tile: B not a multiple of the row tile (masked writeback) ---
    Bp = 200
    xp = jax.random.normal(k_part, (Bp, embedding_dim), dtype=jnp.float32)
    outp = jax.block_until_ready(loglinear_forward(xp, weight, bias, force_pallas=True))
    refp = xp @ weight + bias.reshape(1, 1)
    assert outp.shape == (Bp, 1)
    assert jnp.allclose(outp, refp, atol=1e-5, rtol=1e-5)

    # --- auto path: tiny problem falls back to XLA (same numerics) ---
    out_auto = jax.block_until_ready(loglinear_forward(x, weight, bias))
    assert jnp.allclose(out_auto, ref, atol=1e-5, rtol=1e-5)

    print("KERNEL_OK")
</pallas_src>

<mosaic_0001>
module attributes {stable_mosaic.version = 11 : i64} {
  func.func @_loglinear_kernel(%arg0: i32, %arg1: memref<16x64xf32, #tpu.memory_space<vmem>>, %arg2: memref<1x64xf32, #tpu.memory_space<vmem>>, %arg3: memref<1x1xf32, #tpu.memory_space<smem>>, %arg4: memref<16x1xf32, #tpu.memory_space<vmem>>) attributes {dimension_semantics = [#tpu.dimension_semantics<parallel>], iteration_bounds = array<i64: 1>, scalar_prefetch = 0 : i64, scratch_operands = 0 : i64, tpu.core_type = #tpu.core_type<tc>, window_params = [{transform_indices = @transform_0, window_bounds = array<i64: 16, 64>}, {pipeline_mode = #tpu.pipeline_mode<synchronous>, transform_indices = @transform_1, window_bounds = array<i64: 1, 64>}, {transform_indices = @transform_2, window_bounds = array<i64: 1, 1>}, {transform_indices = @transform_3, window_bounds = array<i64: 16, 1>}]} {
    %c0 = arith.constant 0 : index
    %c0_0 = arith.constant 0 : index
    %0 = vector.load %arg1[%c0, %c0_0] : memref<16x64xf32, #tpu.memory_space<vmem>>, vector<16x64xf32>
    %c0_1 = arith.constant 0 : index
    %c0_2 = arith.constant 0 : index
    %1 = vector.load %arg2[%c0_1, %c0_2] : memref<1x64xf32, #tpu.memory_space<vmem>>, vector<1x64xf32>
    %2 = vector.broadcast %1 : vector<1x64xf32> to vector<16x64xf32>
    %3 = arith.mulf %0, %2 : vector<16x64xf32>
    %cst = arith.constant dense<0.000000e+00> : vector<16xf32>
    %4 = vector.multi_reduction <add>, %3, %cst [1] : vector<16x64xf32> to vector<16xf32>
    %5 = vector.shape_cast %4 : vector<16xf32> to vector<16x1xf32>
    %c0_3 = arith.constant 0 : index
    %c0_4 = arith.constant 0 : index
    %6 = memref.load %arg3[%c0_3, %c0_4] : memref<1x1xf32, #tpu.memory_space<smem>>
    %7 = vector.broadcast %6 : f32 to vector<16x1xf32>
    %8 = arith.addf %5, %7 : vector<16x1xf32>
    %c0_5 = arith.constant 0 : index
    %c0_6 = arith.constant 0 : index
    %9 = vector.load %arg4[%c0_5, %c0_6] : memref<16x1xf32, #tpu.memory_space<vmem>>, vector<16x1xf32>
    tpu.vector_store %arg4[%c0_5, %c0_6], %8 {strides = array<i32>} : memref<16x1xf32, #tpu.memory_space<vmem>>, vector<16x1xf32>,
    return
  }
  func.func @transform_0(%arg0: i32) -> (i32, i32) {
    %c0_i32 = arith.constant 0 : i32
    %c0_i32_0 = arith.constant 0 : i32
    return %arg0, %c0_i32 : i32, i32
  }
  func.func @transform_1(%arg0: i32) -> (i32, i32) {
    %c0_i32 = arith.constant 0 : i32
    %c0_i32_0 = arith.constant 0 : i32
    %c0_i32_1 = arith.constant 0 : i32
    return %c0_i32, %c0_i32_0 : i32, i32
  }
  func.func @transform_2(%arg0: i32) -> (i32, i32) {
    %c0_i32 = arith.constant 0 : i32
    %c0_i32_0 = arith.constant 0 : i32
    %c0_i32_1 = arith.constant 0 : i32
    return %c0_i32, %c0_i32_0 : i32, i32
  }
  func.func @transform_3(%arg0: i32) -> (i32, i32) {
    %c0_i32 = arith.constant 0 : i32
    %c0_i32_0 = arith.constant 0 : i32
    return %arg0, %c0_i32 : i32, i32
  }
}

</mosaic_0001>

<llo_original>
// kernel: tpu_custom_call.1
$region0: #{tpu_custom_call.1}
  #allocation0 [shape = 'u32[]', space=smem, size = 0x4, offset = 0x4, fixed_abs, tag = 'smem constant byte address 0x4 - core index']
  #allocation1 [shape = 'u32[144,128]{1,0:T(1,128)}', space=vmem, size = 0x12000, scoped, tag = 'internal scratch']
  #allocation2 [shape = 'f32[1,1]{1,0:T(1,128)S(6)}', space=smem, size = 0x200, scoped, tag = 'scoped memory for tpu_custom_call.1']
  %s0 = inlined_call_operand.hbm [shape: f32[16,64], index: 0, kind: input, shape index: {}]
  %s1 = inlined_call_operand.vmem [shape: f32[1,64], index: 1, kind: input, shape index: {}]
  %s2 = inlined_call_operand.<no memory space> [shape: f32[1,1], index: 2, kind: input, shape index: {}]
  %s3 = inlined_call_operand.vmem [shape: f32[16,1], index: 3, kind: output, shape index: {}]
  %s4 = sld [smem:[#allocation0]]
  $region26: #{tpu_custom_call.1} parent=0
    _
  %s6 = ssub.s32 1, %s4
  %s7 = scalar_select 0, %s6, %s4
  %8 = sst [smem:[#allocation2]] %s2
  $region1: #{tpu_custom_call.1} parent=0
    #allocation3 [shape = 'u8[8192]{0}', space=vmem, size = 0x2000, scoped, tag = 'input window, operand 0, single buffered']
    #allocation4 [shape = 's32[1]{0}', space=sflag, size = 0x4, scoped, tag = 'scoped memory for tpu_custom_call.1']
    %9 = vsyncpa [#allocation4], 0
    // Predicated region
    $region2: #{tpu_custom_call.1} parent=1 // pred_check
      _
    $region3: #{tpu_custom_call.1} parent=1 // pred_check_branch
      %11 = sbr.rel (0) target = $region5
    $region4: #{tpu_custom_call.1} parent=1 // pred_region
      %s13 = ssub.s32 256, 256
      %14 = vsyncadd [#allocation4], %s13
      %s15 = sshll.u32 [#allocation3], 4
      %s16 = int_to_ptr.vmem [resolvable:$true] %s15
      %21 = dma.hbm_to_vmem [thread:$0]  %s0, 256, %s16, [#allocation4], 128, 128, 8
    $region5: #{tpu_custom_call.1} parent=1 // pred_fallthru
      _
    // Predicated region
    $region6: #{tpu_custom_call.1} parent=1 // pred_check
      _
    $region7: #{tpu_custom_call.1} parent=1 // pred_check_branch
      %23 = sbr.rel (0) target = $region9
    $region8: #{tpu_custom_call.1} parent=1 // pred_region
      _
    $region9: #{tpu_custom_call.1} parent=1 // pred_fallthru
      _
    // Predicated region
    $region10: #{tpu_custom_call.1} parent=1 // pred_check
      _
    $region11: #{tpu_custom_call.1} parent=1 // pred_check_branch
      %25 = sbr.rel (0) target = $region13
    $region12: #{tpu_custom_call.1} parent=1 // pred_region
      _
    $region13: #{tpu_custom_call.1} parent=1 // pred_fallthru
      _
    // Predicated region
    $region14: #{tpu_custom_call.1} parent=1 // pred_check
      _
    $region15: #{tpu_custom_call.1} parent=1 // pred_check_branch
      %27 = sbr.rel (0) target = $region17
    $region16: #{tpu_custom_call.1} parent=1 // pred_region
      %28 = dma.done [#allocation4], 256
    $region17: #{tpu_custom_call.1} parent=1 // pred_fallthru
      _
    %v29 = vld [vmem:[#allocation3] sm:$0xff]
    %v30 = vld [vmem:[#allocation3 + $0x8] sm:$0xff]
    %v31 = vld [vmem:[%s1] sm:$0x1]
    %v33 = vlaneseq
    %v34 = vshrl.u32 %v33, 7
    %v35 = vsub.s32 0, %v34
    %v36 = vrot.slane %v31, %v35
    %v38 = vmul.f32 %v29, %v36
    %v39 = vmul.f32 %v30, %v36
    %vm40 = vcmask 523264
    %v41 = vsel %vm40, %v38, 0.0
    %42 = vadd.xlane.f32.xlu0 %v41
    %v43 = vpop.xlane.xlu0 %42
    %v44 = vsel %vm40, %v39, 0.0
    %45 = vadd.xlane.f32.xlu0 %v44
    %v46 = vpop.xlane.xlu0 %45
    %s47 = sld [smem:[#allocation2]]
    %v48 = vstv %s47
    %v49 = vadd.f32 %v43, %v48
    %v50 = vadd.f32 %v46, %v48
    %vm51 = vcmask 7168
    %52 = vst.msk [vmem:[%s3] sm:$0xff] %vm51, %v49
    %53 = vst.msk [vmem:[%s3 + $0x8] sm:$0xff] %vm51, %v50
    // Predicated region
    $region18: #{tpu_custom_call.1} parent=1 // pred_check
      _
    $region19: #{tpu_custom_call.1} parent=1 // pred_check_branch
      %55 = sbr.rel (0) target = $region21
    $region20: #{tpu_custom_call.1} parent=1 // pred_region
      _
    $region21: #{tpu_custom_call.1} parent=1 // pred_fallthru
      _
    // Predicated region
    $region22: #{tpu_custom_call.1} parent=1 // pred_check
      _
    $region23: #{tpu_custom_call.1} parent=1 // pred_check_branch
      %57 = sbr.rel (0) target = $region25
    $region24: #{tpu_custom_call.1} parent=1 // pred_region
      _
    $region25: #{tpu_custom_call.1} parent=1 // pred_fallthru
      _
    %58 = vsyncpa [#allocation4], 1

</llo_original>
